<compile_context>
chip_gen: v5e
topology: v5e:2x2
jax: 0.10.0
libtpu: 0.0.40
codegen_flags: <defaults>
</compile_context>

<pallas_src>
import jax
import jax.numpy as jnp
from jax.experimental import pallas as pl
from jax.experimental.pallas import tpu as pltpu


_LANE_CHUNK = 2048      # 16 f32 vregs per row-chunk: FMA chain stays in vregs.
_TB_CAP = 131072        # double-buffered (3,tb)+(1,tb) f32 blocks ~= 16 MiB VMEM.


def _round_up(n: int, m: int) -> int:
    return ((n + m - 1) // m) * m


def _linear_kernel(w_ref, b_ref, xt_ref, o_ref):
    # w_ref : (1, 3) f32 in SMEM   (PyTorch weight shape (out=1, in=3))
    # b_ref : (1,)   f32 in SMEM
    # xt_ref: (3, TB) f32 in VMEM  (features on sublanes, batch on lanes)
    # o_ref : (1, TB) f32 in VMEM  (lane-dense output row)
    w0 = w_ref[0, 0]
    w1 = w_ref[0, 1]
    w2 = w_ref[0, 2]
    b = b_ref[0]

    tb = xt_ref.shape[1]
    chunk = min(_LANE_CHUNK, tb)
    # Wrapper guarantees tb % chunk == 0.  Static slices are zero-cost ref
    # views; each chunk's unrolled K=3 FMA chain fits comfortably in vregs.
    for c in range(tb // chunk):
        lo = c * chunk
        hi = lo + chunk
        x0 = xt_ref[0:1, lo:hi]
        x1 = xt_ref[1:2, lo:hi]
        x2 = xt_ref[2:3, lo:hi]
        o_ref[0:1, lo:hi] = (x0 * w0 + x1 * w1 + x2 * w2 + b).astype(o_ref.dtype)


def linear_fc1_feature_major(xt, weight, bias, *, tb: int = _TB_CAP):
    """Feature-major entry point: xt (3, B) f32 -> (1, B) f32.

    No wrapper-side copies; use this when the producer can emit feature-major
    activations directly.  `tb` is an upper bound on the batch tile (lanes).
    """
    K, B = xt.shape
    assert K == 3, "MyModel.fc1 expects 3 input features"

    xt = xt.astype(jnp.float32)
    weight = jnp.asarray(weight, dtype=jnp.float32).reshape(1, 3)
    bias = jnp.asarray(bias, dtype=jnp.float32).reshape(1)

    # --- tile-size selection --------------------------------------------------
    # VMEM-safe cap (user-overridable downward), multiple of 128 lanes.
    tb_cap = max(128, min(int(tb), _TB_CAP))
    tb_cap = (tb_cap // 128) * 128
    # Scale the tile with B: aim for >=4 grid steps (keeps both v7x TensorCores
    # and the DMA pipeline busy) while staying as large as possible to amortize
    # the ~0.35 us per-grid-step overhead.
    tb_eff = _round_up(max(1, -(-B // 4)), 128)
    tb_eff = min(tb_eff, tb_cap)
    if tb_eff > _LANE_CHUNK:
        tb_eff = (tb_eff // _LANE_CHUNK) * _LANE_CHUNK  # exact in-kernel chunking

    grid = (pl.cdiv(B, tb_eff),)  # partial last block; no jnp.pad of the input.

    out = pl.pallas_call(
        _linear_kernel,
        out_shape=jax.ShapeDtypeStruct((1, B), jnp.float32),
        grid=grid,
        in_specs=[
            # Tiny constants live in SMEM (scalar path), whole-array, no tiling.
            pl.BlockSpec(memory_space=pltpu.MemorySpace.SMEM),  # weight (1, 3)
            pl.BlockSpec(memory_space=pltpu.MemorySpace.SMEM),  # bias   (1,)
            # Batch-tiled, lane-dense input block.
            pl.BlockSpec((3, tb_eff), lambda i: (0, i)),
        ],
        out_specs=pl.BlockSpec((1, tb_eff), lambda i: (0, i)),
        compiler_params=pltpu.CompilerParams(
            dimension_semantics=("parallel",),
            vmem_limit_bytes=32 * 1024 * 1024,  # safe on v5e/v6e/v7x; ~2x headroom
        ),
    )(weight, bias, xt)
    return out


def linear_fc1(x, weight, bias, *, tb: int = _TB_CAP):
    """x: (B, 3) f32 -> (B, 1) f32, matching torch.nn.Linear(3, 1).forward."""
    B, K = x.shape
    assert K == 3, "MyModel.fc1 expects 3 input features"
    # The transpose is the one wrapper-side copy (puts batch on the lane axis);
    # producers that can emit (3, B) directly should call
    # linear_fc1_feature_major and skip it entirely.
    xt = x.astype(jnp.float32).T
    out = linear_fc1_feature_major(xt, weight, bias, tb=tb)
    return out.reshape(B, 1)


def my_model_forward(x, weight, bias, *, min_pallas_batch: int = 4096):
    """MyModel.forward.  For tiny batches the pallas_call + layout plumbing
    costs more than the math itself; let XLA fuse a plain affine instead and
    reserve the kernel path for large B."""
    if x.shape[0] < min_pallas_batch:
        return (x.astype(jnp.float32) @ weight.astype(jnp.float32).T
                + bias.astype(jnp.float32))
    return linear_fc1(x, weight, bias)


if __name__ == "__main__":
    key = jax.random.PRNGKey(0)
    kx, kw, kb, kx2, kx3 = jax.random.split(key, 5)

    # Deterministic "parameters" matching nn.Linear(3, 1): weight (1,3), bias (1,)
    weight = jax.random.normal(kw, (1, 3), dtype=jnp.float32) * 0.5
    bias = jax.random.normal(kb, (1,), dtype=jnp.float32) * 0.1

    def ref(x):
        return x @ weight.T + bias

    # Small batch consistent with the module's forward: single tile, partial block.
    x = jax.random.normal(kx, (8, 3), dtype=jnp.float32)
    out = jax.block_until_ready(linear_fc1(x, weight, bias))
    assert out.shape == (8, 1)
    assert jnp.allclose(out, ref(x), atol=1e-5, rtol=1e-5)

    # Multi-tile grid + ragged final block (B not a multiple of the tile).
    x2 = jax.random.normal(kx2, (1000, 3), dtype=jnp.float32)
    out2 = jax.block_until_ready(linear_fc1(x2, weight, bias, tb=256))
    assert out2.shape == (1000, 1)
    assert jnp.allclose(out2, ref(x2), atol=1e-5, rtol=1e-5)

    # Default tile selection path: B-scaled tile, multi-step grid,
    # multi-chunk in-kernel strip-mining, partial last block.
    x3 = jax.random.normal(kx3, (20000, 3), dtype=jnp.float32)
    out3 = jax.block_until_ready(linear_fc1(x3, weight, bias))
    assert out3.shape == (20000, 1)
    assert jnp.allclose(out3, ref(x3), atol=1e-5, rtol=1e-5)

    # Dispatcher sanity: tiny batches bypass Pallas with identical semantics.
    outd = jax.block_until_ready(my_model_forward(x, weight, bias))
    assert jnp.allclose(outd, ref(x), atol=1e-5, rtol=1e-5)

    print("KERNEL_OK")
</pallas_src>

<mosaic_0001>
module attributes {stable_mosaic.version = 11 : i64} {
  func.func @_linear_kernel(%arg0: i32, %arg1: memref<1x3xf32, #tpu.memory_space<smem>>, %arg2: memref<1xf32, #tpu.memory_space<smem>>, %arg3: memref<3x128xf32, #tpu.memory_space<vmem>>, %arg4: memref<1x128xf32, #tpu.memory_space<vmem>>) attributes {dimension_semantics = [#tpu.dimension_semantics<parallel>], iteration_bounds = array<i64: 1>, scalar_prefetch = 0 : i64, scratch_operands = 0 : i64, tpu.core_type = #tpu.core_type<tc>, window_params = [{transform_indices = @transform_0, window_bounds = array<i64: 1, 3>}, {transform_indices = @transform_1, window_bounds = array<i64: 1>}, {transform_indices = @transform_2, window_bounds = array<i64: 3, 128>}, {transform_indices = @transform_3, window_bounds = array<i64: 1, 128>}]} {
    %c0 = arith.constant 0 : index
    %c0_0 = arith.constant 0 : index
    %0 = memref.load %arg1[%c0, %c0_0] : memref<1x3xf32, #tpu.memory_space<smem>>
    %c0_1 = arith.constant 0 : index
    %c1 = arith.constant 1 : index
    %1 = memref.load %arg1[%c0_1, %c1] : memref<1x3xf32, #tpu.memory_space<smem>>
    %c0_2 = arith.constant 0 : index
    %c2 = arith.constant 2 : index
    %2 = memref.load %arg1[%c0_2, %c2] : memref<1x3xf32, #tpu.memory_space<smem>>
    %c0_3 = arith.constant 0 : index
    %3 = memref.load %arg2[%c0_3] : memref<1xf32, #tpu.memory_space<smem>>
    %c0_4 = arith.constant 0 : index
    %c0_5 = arith.constant 0 : index
    %4 = vector.load %arg3[%c0_4, %c0_5] : memref<3x128xf32, #tpu.memory_space<vmem>>, vector<1x128xf32>
    %c1_6 = arith.constant 1 : index
    %c0_7 = arith.constant 0 : index
    %5 = vector.load %arg3[%c1_6, %c0_7] : memref<3x128xf32, #tpu.memory_space<vmem>>, vector<1x128xf32>
    %c2_8 = arith.constant 2 : index
    %c0_9 = arith.constant 0 : index
    %6 = vector.load %arg3[%c2_8, %c0_9] : memref<3x128xf32, #tpu.memory_space<vmem>>, vector<1x128xf32>
    %7 = vector.broadcast %0 : f32 to vector<1x128xf32>
    %8 = arith.mulf %4, %7 : vector<1x128xf32>
    %9 = vector.broadcast %1 : f32 to vector<1x128xf32>
    %10 = arith.mulf %5, %9 : vector<1x128xf32>
    %11 = arith.addf %8, %10 : vector<1x128xf32>
    %12 = vector.broadcast %2 : f32 to vector<1x128xf32>
    %13 = arith.mulf %6, %12 : vector<1x128xf32>
    %14 = arith.addf %11, %13 : vector<1x128xf32>
    %15 = vector.broadcast %3 : f32 to vector<1x128xf32>
    %16 = arith.addf %14, %15 : vector<1x128xf32>
    %c0_10 = arith.constant 0 : index
    %c0_11 = arith.constant 0 : index
    %17 = vector.load %arg4[%c0_10, %c0_11] : memref<1x128xf32, #tpu.memory_space<vmem>>, vector<1x128xf32>
    tpu.vector_store %arg4[%c0_10, %c0_11], %16 {strides = array<i32>} : memref<1x128xf32, #tpu.memory_space<vmem>>, vector<1x128xf32>,
    return
  }
  func.func @transform_0(%arg0: i32) -> (i32, i32) {
    %c0_i32 = arith.constant 0 : i32
    %c0_i32_0 = arith.constant 0 : i32
    %c0_i32_1 = arith.constant 0 : i32
    return %c0_i32, %c0_i32_0 : i32, i32
  }
  func.func @transform_1(%arg0: i32) -> i32 {
    %c0_i32 = arith.constant 0 : i32
    %c0_i32_0 = arith.constant 0 : i32
    return %c0_i32 : i32
  }
  func.func @transform_2(%arg0: i32) -> (i32, i32) {
    %c0_i32 = arith.constant 0 : i32
    %c0_i32_0 = arith.constant 0 : i32
    return %c0_i32, %arg0 : i32, i32
  }
  func.func @transform_3(%arg0: i32) -> (i32, i32) {
    %c0_i32 = arith.constant 0 : i32
    %c0_i32_0 = arith.constant 0 : i32
    return %c0_i32, %arg0 : i32, i32
  }
}

</mosaic_0001>

<llo_original>
// kernel: tpu_custom_call.1
$region0: #{tpu_custom_call.1}
  #allocation0 [shape = 'u32[]', space=smem, size = 0x4, offset = 0x4, fixed_abs, tag = 'smem constant byte address 0x4 - core index']
  #allocation1 [shape = 'u32[72,128]{1,0:T(1,128)}', space=vmem, size = 0x9000, scoped, tag = 'internal scratch']
  #allocation2 [shape = 'f32[1]{0:T(128)S(6)}', space=smem, size = 0x200, scoped, tag = 'scoped memory for tpu_custom_call.1']
  %s0 = inlined_call_operand.vmem [shape: f32[1,3], index: 0, kind: input, shape index: {}]
  %s1 = inlined_call_operand.<no memory space> [shape: f32[1], index: 1, kind: input, shape index: {}]
  %s2 = inlined_call_operand.hbm [shape: f32[3,8], index: 2, kind: input, shape index: {}]
  %s3 = inlined_call_operand.hbm [shape: f32[1,8], index: 3, kind: output, shape index: {}]
  %s4 = sld [smem:[#allocation0]]
  $region30: #{tpu_custom_call.1} parent=0
    _
  %s6 = ssub.s32 1, %s4
  %s7 = scalar_select 0, %s6, %s4
  %8 = sst [smem:[#allocation2]] %s1
  $region1: #{tpu_custom_call.1} parent=0
    #allocation3 [shape = 'u8[512]{0}', space=smem, size = 0x200, scoped, tag = 'input window, operand 0, single buffered']
    #allocation4 [shape = 's32[1]{0}', space=sflag, size = 0x4, scoped, tag = 'scoped memory for tpu_custom_call.1']
    #allocation5 [shape = 's32[1]{0}', space=sflag, size = 0x4, scoped, tag = 'scoped memory for tpu_custom_call.1']
    #allocation6 [shape = 's32[1]{0}', space=sflag, size = 0x4, scoped, tag = 'scoped memory for tpu_custom_call.1']
    #allocation7 [shape = 'u8[2048]{0}', space=vmem, size = 0x800, scoped, tag = 'input window, operand 2, single buffered']
    #allocation8 [shape = 'u8[512]{0}', space=vmem, size = 0x400, scoped, tag = 'output window, operand 0, single buffered']
    %9 = vsyncpa [#allocation6], 0
    %10 = vsyncpa [#allocation4], 0
    %11 = vsyncpa [#allocation5], 0
    // Predicated region
    $region2: #{tpu_custom_call.1} parent=1 // pred_check
      _
    $region3: #{tpu_custom_call.1} parent=1 // pred_check_branch
      %13 = sbr.rel (0) target = $region5
    $region4: #{tpu_custom_call.1} parent=1 // pred_region
      %15 = vsyncadd [#allocation6], 0
      %s17 = sshll.u32 %s0, 4
      %s18 = int_to_ptr.vmem [resolvable:$true] %s17
      %20 = dma.vmem_to_smem %s18, 16, [#allocation3], [#allocation6]
    $region5: #{tpu_custom_call.1} parent=1 // pred_fallthru
      _
    // Predicated region
    $region6: #{tpu_custom_call.1} parent=1 // pred_check
      _
    $region7: #{tpu_custom_call.1} parent=1 // pred_check_branch
      %22 = sbr.rel (0) target = $region9
    $region8: #{tpu_custom_call.1} parent=1 // pred_region
      _
    $region9: #{tpu_custom_call.1} parent=1 // pred_fallthru
      _
    // Predicated region
    $region10: #{tpu_custom_call.1} parent=1 // pred_check
      _
    $region11: #{tpu_custom_call.1} parent=1 // pred_check_branch
      %24 = sbr.rel (0) target = $region13
    $region12: #{tpu_custom_call.1} parent=1 // pred_region
      %26 = vsyncadd [#allocation4], 0
      %s28 = sshll.u32 %s2, 4
      %s29 = int_to_ptr.hbm [resolvable:$true] %s28
      %s30 = sshll.u32 [#allocation7], 4
      %s31 = int_to_ptr.vmem [resolvable:$true] %s30
      %33 = dma.hbm_to_vmem [thread:$0]  %s29, 64, %s31, [#allocation4]
    $region13: #{tpu_custom_call.1} parent=1 // pred_fallthru
      _
    // Predicated region
    $region14: #{tpu_custom_call.1} parent=1 // pred_check
      _
    $region15: #{tpu_custom_call.1} parent=1 // pred_check_branch
      %35 = sbr.rel (0) target = $region17
    $region16: #{tpu_custom_call.1} parent=1 // pred_region
      %37 = dma.done [#allocation6], 16
    $region17: #{tpu_custom_call.1} parent=1 // pred_fallthru
      _
    // Predicated region
    $region18: #{tpu_custom_call.1} parent=1 // pred_check
      _
    $region19: #{tpu_custom_call.1} parent=1 // pred_check_branch
      %39 = sbr.rel (0) target = $region21
    $region20: #{tpu_custom_call.1} parent=1 // pred_region
      %41 = dma.done [#allocation4], 64
    $region21: #{tpu_custom_call.1} parent=1 // pred_fallthru
      _
    %42 = sfence
    %s43 = sld [smem:[#allocation3]]
    %s44 = sld [smem:[#allocation3 + $0x1]]
    %s45 = sld [smem:[#allocation3 + $0x2]]
    %s46 = sld [smem:[#allocation2]]
    %v47 = vld [vmem:[#allocation7] sm:$0x1]
    %v48 = vld [vmem:[#allocation7 + $0x1] sm:$0x1]
    %v49 = vld [vmem:[#allocation7 + $0x2] sm:$0x1]
    %v50 = vstv %s43
    %v51 = vmul.f32 %v47, %v50
    %v52 = vstv %s44
    %v53 = vmul.f32 %v48, %v52
    %v54 = vadd.f32 %v51, %v53
    %v55 = vstv %s45
    %v56 = vmul.f32 %v49, %v55
    %v57 = vadd.f32 %v54, %v56
    %v58 = vstv %s46
    %v59 = vadd.f32 %v57, %v58
    %60 = vst [vmem:[#allocation8] sm:$0x1] %v59
    // Predicated region
    $region22: #{tpu_custom_call.1} parent=1 // pred_check
      _
    $region23: #{tpu_custom_call.1} parent=1 // pred_check_branch
      %62 = sbr.rel (0) target = $region25
    $region24: #{tpu_custom_call.1} parent=1 // pred_region
      %64 = vsyncadd [#allocation5], 0
      %s66 = sshll.u32 [#allocation8], 4
      %s67 = int_to_ptr.vmem [resolvable:$true] %s66
      %s68 = sshll.u32 %s3, 4
      %s69 = int_to_ptr.hbm [resolvable:$true] %s68
      %71 = dma.vmem_to_hbm [thread:$0]  %s67, 16, %s69, [#allocation5]
    $region25: #{tpu_custom_call.1} parent=1 // pred_fallthru
      _
    // Predicated region
    $region26: #{tpu_custom_call.1} parent=1 // pred_check
      _
    $region27: #{tpu_custom_call.1} parent=1 // pred_check_branch
      %73 = sbr.rel (0) target = $region29
    $region28: #{tpu_custom_call.1} parent=1 // pred_region
      %75 = dma.done [#allocation5], 16
    $region29: #{tpu_custom_call.1} parent=1 // pred_fallthru
      _
    %76 = vsyncpa [#allocation4], 1
    %77 = vsyncpa [#allocation5], 1
    %78 = vsyncpa [#allocation6], 1

</llo_original>
